<compile_context>
chip_gen: v5e
topology: v5e:2x2
jax: 0.10.0
libtpu: 0.0.40
codegen_flags: <defaults>
</compile_context>

<pallas_src>
import jax
import jax.numpy as jnp
from jax.experimental import pallas as pl
from jax.experimental.pallas import tpu as pltpu


def _round_up(x, m):
    return (x + m - 1) // m * m


def _cdiv(a, b):
    return -(-a // b)


# --------------------------------- kernels ---------------------------------

def _accumulate(acc_ref, contrib):
    """Add per-tile contribution into the (8, d) f32 accumulator."""
    tm, d = contrib.shape
    if d % 128 == 0:
        # Pure-VPU grouped sum over 8-row groups: no per-tile XLU sublane reduce.
        acc_ref[...] += contrib.reshape(tm // 8, 8, d).sum(axis=0)
    else:
        # Small-D fallback (e.g. D=32): one sublane reduce per tile (HBM-bound
        # anyway, so this is hidden).
        acc_ref[0:1, :] += jnp.sum(contrib, axis=0, keepdims=True)


def _epilogue(out_ref, acc_ref):
    s = jnp.sum(acc_ref[...])                                  # single cross-lane reduce
    out_ref[...] = jnp.full(out_ref.shape, s, dtype=jnp.float32)   # lane-dense store


def _t_sum_kernel_unmasked(mu_ref, lv_ref, out_ref, acc_ref):
    i = pl.program_id(1)

    @pl.when(i == 0)
    def _():
        acc_ref[...] = jnp.zeros_like(acc_ref)

    mu = mu_ref[...].astype(jnp.float32)
    lv = lv_ref[...].astype(jnp.float32)
    # Affine constants hoisted: accumulate t = mu^2 + exp(lv) - lv only.
    t = mu * mu + jnp.exp(lv) - lv
    _accumulate(acc_ref, t)

    @pl.when(i == pl.num_programs(1) - 1)
    def _():
        _epilogue(out_ref, acc_ref)


def _t_sum_kernel_masked(mu_ref, lv_ref, mask_ref, out_ref, acc_ref):
    i = pl.program_id(1)

    @pl.when(i == 0)
    def _():
        acc_ref[...] = jnp.zeros_like(acc_ref)

    mu = mu_ref[...].astype(jnp.float32)
    lv = lv_ref[...].astype(jnp.float32)
    mask = mask_ref[...].astype(jnp.float32)                   # (tm, 1), 1.0 = keep row
    t = (mu * mu + jnp.exp(lv) - lv) * mask
    _accumulate(acc_ref, t)

    @pl.when(i == pl.num_programs(1) - 1)
    def _():
        _epilogue(out_ref, acc_ref)


# --------------------------------- wrappers ---------------------------------

def _t_sum(mu, logvar, mask_f=None, *, tile_bytes=4 << 20):
    """Streams (N, D) mu/logvar through the kernel; returns
    (sum of t over all elements fed, number of elements fed).
    Zero-padded elements each contribute exactly exp(0) = 1 when unmasked."""
    n, d = mu.shape
    has_mask = mask_f is not None

    # Byte-budget tile sizing: ~tile_bytes of input per grid step.
    per_row = d * (mu.dtype.itemsize + logvar.dtype.itemsize)
    if has_mask:
        per_row += 128 * 4                       # (tm,1) mask pads to 128 lanes in VMEM
    tm_budget = max(8, (tile_bytes // per_row) // 8 * 8)
    rows_half = _round_up(_cdiv(n, 2), 8)        # each TC handles half the rows
    tm = int(max(8, min(tm_budget, rows_half, 8192)))
    steps = _cdiv(rows_half, tm)
    n_pad = 2 * steps * tm

    if n_pad != n:
        pad = n_pad - n
        mu = jnp.pad(mu, ((0, pad), (0, 0)))
        logvar = jnp.pad(logvar, ((0, pad), (0, 0)))
        if has_mask:
            mask_f = jnp.pad(mask_f, ((0, pad), (0, 0)))   # padded rows masked out

    idx = lambda c, i: (c * steps + i, 0)
    in_specs = [pl.BlockSpec((tm, d), idx),      # mu rows
                pl.BlockSpec((tm, d), idx)]      # logvar rows
    args = [mu, logvar]
    if has_mask:
        in_specs.append(pl.BlockSpec((tm, 1), idx))
        args.append(mask_f)
    kernel = _t_sum_kernel_masked if has_mask else _t_sum_kernel_unmasked

    # Explicit VMEM budget: double-buffered inputs (+ mask) + accumulator + out.
    vmem_bytes = (2 * tm * d * (mu.dtype.itemsize + logvar.dtype.itemsize)
                  + (2 * tm * 128 * 4 if has_mask else 0)
                  + 8 * max(d, 128) * 4
                  + 2 * 8 * 128 * 4
                  + (4 << 20))                               # headroom
    vmem_bytes = int(min(vmem_bytes, 48 << 20))              # <= ~48 MiB: safe on v7x

    out = pl.pallas_call(
        kernel,
        out_shape=jax.ShapeDtypeStruct((2, 8, 128), jnp.float32),
        grid_spec=pltpu.PrefetchScalarGridSpec(
            num_scalar_prefetch=0,
            grid=(2, steps),                     # (core split, streaming reduction)
            in_specs=in_specs,
            out_specs=pl.BlockSpec((1, 8, 128), lambda c, i: (c, 0, 0)),
            scratch_shapes=[pltpu.VMEM((8, d), jnp.float32)],
        ),
        compiler_params=pltpu.CompilerParams(
            dimension_semantics=("parallel", "arbitrary"),
            vmem_limit_bytes=vmem_bytes),
    )(*args)

    s = out[0, 0, 0] + out[1, 0, 0]              # add the two per-core partials
    return s, n_pad * d


def _t_sum_unmasked_packed(mu, logvar, *, tile_bytes=4 << 20):
    """Unmasked fast path with lane-dense repack for small / non-128-multiple D."""
    n, d = mu.shape
    total = n * d
    if d % 128 != 0:
        flat_len = _round_up(total, 128)
        mu_f, lv_f = mu.reshape(-1), logvar.reshape(-1)
        if flat_len != total:
            mu_f = jnp.pad(mu_f, (0, flat_len - total))
            lv_f = jnp.pad(lv_f, (0, flat_len - total))
        mu2 = mu_f.reshape(flat_len // 128, 128)
        lv2 = lv_f.reshape(flat_len // 128, 128)
    else:
        mu2, lv2 = mu, logvar
    return _t_sum(mu2, lv2, None, tile_bytes=tile_bytes)


def kl_div_loss_stats(mu, logvar, label_ids=None, mask_key=0, *, tile_bytes=4 << 20):
    """Jit-friendly (no host sync): returns (loss, num_selected_rows as f32).
    loss == 0.0 when no row is selected."""
    n, d = mu.shape
    if label_ids is None:
        s, kernel_elems = _t_sum_unmasked_packed(mu, logvar, tile_bytes=tile_bytes)
        s = s - jnp.float32(kernel_elems - n * d)   # zero-pad elements contribute exp(0)=1
        denom = jnp.float32(n * d)
        loss = s / (2.0 * denom) - 0.5              # == mean(-(1+lv-mu^2-e^lv)/2)
        return loss, jnp.float32(n)

    sel = jnp.asarray(label_ids) == mask_key
    count = jnp.sum(sel).astype(jnp.float32)        # stays on device
    mask_f = sel.astype(jnp.float32)[:, None]       # (N, 1)
    s, _ = _t_sum(mu, logvar, mask_f, tile_bytes=tile_bytes)
    denom = count * jnp.float32(d)
    loss = jnp.where(count > 0, s / (2.0 * jnp.maximum(denom, 1.0)) - 0.5,
                     jnp.float32(0.0))
    return loss, count


def kl_div_loss(mu, logvar, label_ids=None, mask_key=0):
    """Mirrors KLDivLoss.forward (may return None). Single host sync at the
    boundary only; use kl_div_loss_stats inside jitted training loops."""
    loss, count = kl_div_loss_stats(mu, logvar, label_ids, mask_key)
    if label_ids is not None and int(jax.device_get(count)) == 0:
        return None     # TODO(synk): data-dependent None has no traceable equivalent
    return loss


def kl_div_loss_ref(mu, logvar, label_ids=None, mask_key=0):
    """Pure-JAX reference mirroring the PyTorch module line by line."""
    import numpy as np
    kl = -(1.0 + logvar - jnp.square(mu) - jnp.exp(logvar)) / 2.0
    if label_ids is not None:
        idx = np.nonzero(np.asarray(label_ids) == mask_key)[0]
        if idx.size == 0:
            return None
        kl = kl[idx]
    return jnp.mean(jnp.mean(kl, axis=1))


if __name__ == "__main__":
    N, D = 64, 32
    key = jax.random.PRNGKey(0)
    k_mu, k_lv, k_lab = jax.random.split(key, 3)
    mu = jax.random.normal(k_mu, (N, D), dtype=jnp.float32)
    logvar = 0.1 * jax.random.normal(k_lv, (N, D), dtype=jnp.float32)
    label_ids = jax.random.randint(k_lab, (N,), 0, 2, dtype=jnp.int32)

    # Masked path (keep rows with label == mask_key).
    loss_masked = kl_div_loss(mu, logvar, label_ids, mask_key=0)
    ref_masked = kl_div_loss_ref(mu, logvar, label_ids, mask_key=0)
    if ref_masked is None:
        assert loss_masked is None
    else:
        loss_masked = jax.block_until_ready(loss_masked)
        assert jnp.allclose(loss_masked, ref_masked, rtol=1e-5, atol=1e-5), (
            loss_masked, ref_masked)

    # Unmasked path (label_ids is None), lane-dense repack since D < 128.
    loss_all = jax.block_until_ready(kl_div_loss(mu, logvar, None))
    ref_all = kl_div_loss_ref(mu, logvar, None)
    assert jnp.allclose(loss_all, ref_all, rtol=1e-5, atol=1e-5), (loss_all, ref_all)

    # Jit-friendly device-only path (no host sync inside).
    if ref_masked is not None:
        stats_jit = jax.jit(lambda m, lv, lab: kl_div_loss_stats(m, lv, lab, 0))
        loss_j, cnt_j = stats_jit(mu, logvar, label_ids)
        loss_j = jax.block_until_ready(loss_j)
        assert jnp.allclose(loss_j, ref_masked, rtol=1e-5, atol=1e-5), (loss_j, ref_masked)

    # bf16 inputs: halves HBM bytes; kernel math stays f32.
    loss_bf16 = jax.block_until_ready(
        kl_div_loss(mu.astype(jnp.bfloat16), logvar.astype(jnp.bfloat16), None))
    assert jnp.allclose(loss_bf16, ref_all, rtol=3e-2, atol=3e-2), (loss_bf16, ref_all)

    print("KERNEL_OK")
</pallas_src>

<mosaic_0001>
module attributes {stable_mosaic.version = 11 : i64} {
  func.func @_t_sum_kernel_masked(%arg0: i32, %arg1: i32, %arg2: memref<32x32xf32, #tpu.memory_space<vmem>>, %arg3: memref<32x32xf32, #tpu.memory_space<vmem>>, %arg4: memref<32x1xf32, #tpu.memory_space<vmem>>, %arg5: memref<1x8x128xf32, #tpu.memory_space<vmem>>, %arg6: memref<8x32xf32, #tpu.memory_space<vmem>>) attributes {dimension_semantics = [#tpu.dimension_semantics<parallel>, #tpu.dimension_semantics<arbitrary>], iteration_bounds = array<i64: 2, 1>, scalar_prefetch = 0 : i64, scratch_operands = 1 : i64, tpu.core_type = #tpu.core_type<tc>, window_params = [{transform_indices = @transform_0, window_bounds = array<i64: 32, 32>}, {transform_indices = @transform_1, window_bounds = array<i64: 32, 32>}, {transform_indices = @transform_2, window_bounds = array<i64: 32, 1>}, {transform_indices = @transform_3, window_bounds = array<i64: 1, 8, 128>}]} {
    %c0_i32 = arith.constant 0 : i32
    %0 = arith.cmpi eq, %arg1, %c0_i32 : i32
    %1 = arith.extui %0 : i1 to i32
    %c0_i32_0 = arith.constant 0 : i32
    %2 = arith.cmpi ne, %1, %c0_i32_0 : i32
    scf.if %2 {
      %cst_12 = arith.constant 0.000000e+00 : f32
      %20 = vector.broadcast %cst_12 : f32 to vector<8x32xf32>
      %c0_13 = arith.constant 0 : index
      %c0_14 = arith.constant 0 : index
      %21 = vector.load %arg6[%c0_13, %c0_14] : memref<8x32xf32, #tpu.memory_space<vmem>>, vector<8x32xf32>
      tpu.vector_store %arg6[%c0_13, %c0_14], %20 {strides = array<i32>} : memref<8x32xf32, #tpu.memory_space<vmem>>, vector<8x32xf32>,
    } else {
    }
    %c0 = arith.constant 0 : index
    %c0_1 = arith.constant 0 : index
    %3 = vector.load %arg2[%c0, %c0_1] : memref<32x32xf32, #tpu.memory_space<vmem>>, vector<32x32xf32>
    %c0_2 = arith.constant 0 : index
    %c0_3 = arith.constant 0 : index
    %4 = vector.load %arg3[%c0_2, %c0_3] : memref<32x32xf32, #tpu.memory_space<vmem>>, vector<32x32xf32>
    %c0_4 = arith.constant 0 : index
    %c0_5 = arith.constant 0 : index
    %5 = vector.load %arg4[%c0_4, %c0_5] : memref<32x1xf32, #tpu.memory_space<vmem>>, vector<32x1xf32>
    %6 = arith.mulf %3, %3 : vector<32x32xf32>
    %7 = math.exp %4 : vector<32x32xf32>
    %8 = arith.addf %6, %7 : vector<32x32xf32>
    %9 = arith.subf %8, %4 : vector<32x32xf32>
    %10 = vector.broadcast %5 : vector<32x1xf32> to vector<32x32xf32>
    %11 = arith.mulf %9, %10 : vector<32x32xf32>
    %c0_6 = arith.constant 0 : index
    %c0_7 = arith.constant 0 : index
    %12 = vector.load %arg6[%c0_6, %c0_7] : memref<8x32xf32, #tpu.memory_space<vmem>>, vector<1x32xf32>
    %cst = arith.constant dense<0.000000e+00> : vector<32xf32>
    %13 = vector.multi_reduction <add>, %11, %cst [0] : vector<32x32xf32> to vector<32xf32>
    %14 = vector.shape_cast %13 : vector<32xf32> to vector<1x32xf32>
    %15 = arith.addf %12, %14 : vector<1x32xf32>
    %c0_8 = arith.constant 0 : index
    %c0_9 = arith.constant 0 : index
    %16 = vector.load %arg6[%c0_8, %c0_9] : memref<8x32xf32, #tpu.memory_space<vmem>>, vector<1x32xf32>
    tpu.vector_store %arg6[%c0_8, %c0_9], %15 {strides = array<i32>} : memref<8x32xf32, #tpu.memory_space<vmem>>, vector<1x32xf32>,
    %c0_i32_10 = arith.constant 0 : i32
    %17 = arith.cmpi eq, %arg1, %c0_i32_10 : i32
    %18 = arith.extui %17 : i1 to i32
    %c0_i32_11 = arith.constant 0 : i32
    %19 = arith.cmpi ne, %18, %c0_i32_11 : i32
    scf.if %19 {
      %c0_12 = arith.constant 0 : index
      %c0_13 = arith.constant 0 : index
      %20 = vector.load %arg6[%c0_12, %c0_13] : memref<8x32xf32, #tpu.memory_space<vmem>>, vector<8x32xf32>
      %21 = vector.shape_cast %20 : vector<8x32xf32> to vector<1x8x32xf32>
      %cst_14 = arith.constant dense<0.000000e+00> : vector<1xf32>
      %22 = vector.multi_reduction <add>, %21, %cst_14 [1, 2] : vector<1x8x32xf32> to vector<1xf32>
      %23 = vector.shape_cast %22 : vector<1xf32> to vector<1x1x1xf32>
      %24 = vector.extract %23[0, 0, 0] : f32 from vector<1x1x1xf32>
      %25 = vector.broadcast %24 : f32 to vector<1x8x128xf32>
      %c0_15 = arith.constant 0 : index
      %c0_16 = arith.constant 0 : index
      %c0_17 = arith.constant 0 : index
      %26 = vector.load %arg5[%c0_15, %c0_16, %c0_17] : memref<1x8x128xf32, #tpu.memory_space<vmem>>, vector<1x8x128xf32>
      tpu.vector_store %arg5[%c0_15, %c0_16, %c0_17], %25 {strides = array<i32>} : memref<1x8x128xf32, #tpu.memory_space<vmem>>, vector<1x8x128xf32>,
    } else {
    }
    return
  }
  func.func @transform_0(%arg0: i32, %arg1: i32) -> (i32, i32) {
    %c1_i32 = arith.constant 1 : i32
    %0 = arith.muli %arg0, %c1_i32 : i32
    %1 = arith.addi %0, %arg1 : i32
    %c0_i32 = arith.constant 0 : i32
    %c0_i32_0 = arith.constant 0 : i32
    return %1, %c0_i32 : i32, i32
  }
  func.func @transform_1(%arg0: i32, %arg1: i32) -> (i32, i32) {
    %c1_i32 = arith.constant 1 : i32
    %0 = arith.muli %arg0, %c1_i32 : i32
    %1 = arith.addi %0, %arg1 : i32
    %c0_i32 = arith.constant 0 : i32
    %c0_i32_0 = arith.constant 0 : i32
    return %1, %c0_i32 : i32, i32
  }
  func.func @transform_2(%arg0: i32, %arg1: i32) -> (i32, i32) {
    %c1_i32 = arith.constant 1 : i32
    %0 = arith.muli %arg0, %c1_i32 : i32
    %1 = arith.addi %0, %arg1 : i32
    %c0_i32 = arith.constant 0 : i32
    %c0_i32_0 = arith.constant 0 : i32
    return %1, %c0_i32 : i32, i32
  }
  func.func @transform_3(%arg0: i32, %arg1: i32) -> (i32, i32, i32) {
    %c0_i32 = arith.constant 0 : i32
    %c0_i32_0 = arith.constant 0 : i32
    %c0_i32_1 = arith.constant 0 : i32
    return %arg0, %c0_i32, %c0_i32_0 : i32, i32, i32
  }
}

</mosaic_0001>

<llo_original>
// kernel: tpu_custom_call.1
$region0: #{tpu_custom_call.1}
  #allocation0 [shape = 'u32[]', space=smem, size = 0x4, offset = 0x4, fixed_abs, tag = 'smem constant byte address 0x4 - core index']
  #allocation1 [shape = 'u32[72,128]{1,0:T(1,128)}', space=vmem, size = 0x9000, scoped, tag = 'internal scratch']
  #allocation2 [shape = 'f32[8,32]{1,0:T(8,128)}', space=vmem, size = 0x1000, scoped, tag = 'scratch operand']
  %s0 = inlined_call_operand.vmem [shape: f32[64,32], index: 0, kind: input, shape index: {}]
  %s1 = inlined_call_operand.vmem [shape: f32[64,32], index: 1, kind: input, shape index: {}]
  %s2 = inlined_call_operand.vmem [shape: f32[64,1], index: 2, kind: input, shape index: {}]
  %s3 = inlined_call_operand.hbm [shape: f32[2,8,128], index: 3, kind: output, shape index: {}]
  %s4 = sld [smem:[#allocation0]]
  $region53: #{tpu_custom_call.1} parent=0
    _
  %s6 = ssub.s32 1, %s4
  %s7 = scalar_select 0, %s6, %s4
  $region1: #{tpu_custom_call.1} parent=0
    #allocation3 [shape = 'u8[8192]{0}', space=vmem, size = 0x2000, scoped, tag = 'output window, operand 0']
    #allocation4 [shape = 's32[2]{0}', space=sflag, size = 0x8, scoped, tag = 'scoped memory for tpu_custom_call.1']
    %8 = vsyncpa [#allocation4], 0
    %s9 = scalar_lea.sflag [#allocation4], 1
    %10 = vsyncpa %s9, 0
    loop: start=0, step=1, limit=4
    $region2: #{tpu_custom_call.1} parent=1 // loop_pre_header
      _
    $region3: #{tpu_custom_call.1} parent=1 // loop_header
      %s12 = sphi 0, %s16
      %p13 = scmp.ge.s32.totalorder %s12, 4
      %s19 = sphi 0, %s31
      %s20 = sphi 0, %s27
      %s21 = sphi 0, %s19
      %s22 = sphi 0, %s20
      %s23 = sphi 0, %s21
      %s24 = sphi 0, %s22
      %s36 = sphi 0, %s38
      %s39 = sphi 0, %s36
      %s40 = sphi 0, %s39
      %s56 = sphi 0, %s40
      %s64 = sphi 0, %s66
      %s67 = sphi 0, %s64
      %s68 = sphi 0, %s67
      %s84 = sphi 0, %s68
      %s92 = sphi 0, %s94
      %s95 = sphi 0, %s92
      %s96 = sphi 0, %s95
      %s112 = sphi 0, %s96
      %s118 = sphi 0, %s120
      %s121 = sphi 0, %s118
      %s122 = sphi 0, %s121
      %s138 = sphi 0, %s122
    $region4: #{tpu_custom_call.1} parent=1 // loop_header_branch
      %15 = sbr.rel (%p13) target = $region8
    $region5: #{tpu_custom_call.1} parent=1 // loop_body
      %s17 = ssub.s32 %s12, 1
      %s18 = ssub.s32 %s12, 2
      %s25 = sadd.s32 1, %s20
      %p26 = scmp.ge.s32.totalorder %s25, 1
      %s27 = scalar_select %p26, 0, %s25
      %s28 = sadd.s32 1, %s19
      %s29 = scalar_select %p26, %s28, %s19
      %p30 = scmp.ge.s32.totalorder %s29, 2
      %s31 = scalar_select %p30, 0, %s29
      %s32 = sadd.s32 %s19, %s20
      %s33 = sadd.s32 %s31, %s27
      %s34 = ssub.s32 %s32, %s33
      %p35 = scmp.eq.s32.totalorder %s34, 0
      %s37 = sadd.s32 %s36, 1
      %s38 = scalar_select %p35, %s36, %s37
      %p41 = pneg %p35
      %p42 = scmp.eq.s32.totalorder %s12, 1
      %p43 = por %p41, %p42
      %p44 = scmp.ne.s32.totalorder %s36, %s39
      %p45 = scmp.eq.s32.totalorder %s12, 0
      %p46 = por %p44, %p45
      %p47 = scmp.ne.s32.totalorder %s36, %s39
      %p48 = scmp.eq.s32.totalorder %s17, 1
      %p49 = por %p47, %p48
      %p50 = scmp.ne.s32.totalorder %s39, %s40
      %p51 = scmp.eq.s32.totalorder %s17, 0
      %p52 = por %p50, %p51
      %p53 = scmp.ne.s32.totalorder %s39, %s40
      %p54 = scmp.eq.s32.totalorder %s18, 1
      %p55 = por %p53, %p54
      %p57 = scmp.ne.s32.totalorder %s40, %s56
      %p58 = scmp.eq.s32.totalorder %s18, 0
      %p59 = por %p57, %p58
      %s60 = sadd.s32 %s19, %s20
      %s61 = sadd.s32 %s31, %s27
      %s62 = ssub.s32 %s60, %s61
      %p63 = scmp.eq.s32.totalorder %s62, 0
      %s65 = sadd.s32 %s64, 1
      %s66 = scalar_select %p63, %s64, %s65
      %p69 = pneg %p63
      %p70 = scmp.eq.s32.totalorder %s12, 1
      %p71 = por %p69, %p70
      %p72 = scmp.ne.s32.totalorder %s64, %s67
      %p73 = scmp.eq.s32.totalorder %s12, 0
      %p74 = por %p72, %p73
      %p75 = scmp.ne.s32.totalorder %s64, %s67
      %p76 = scmp.eq.s32.totalorder %s17, 1
      %p77 = por %p75, %p76
      %p78 = scmp.ne.s32.totalorder %s67, %s68
      %p79 = scmp.eq.s32.totalorder %s17, 0
      %p80 = por %p78, %p79
      %p81 = scmp.ne.s32.totalorder %s67, %s68
      %p82 = scmp.eq.s32.totalorder %s18, 1
      %p83 = por %p81, %p82
      %p85 = scmp.ne.s32.totalorder %s68, %s84
      %p86 = scmp.eq.s32.totalorder %s18, 0
      %p87 = por %p85, %p86
      %s88 = sadd.s32 %s19, %s20
      %s89 = sadd.s32 %s31, %s27
      %s90 = ssub.s32 %s88, %s89
      %p91 = scmp.eq.s32.totalorder %s90, 0
      %s93 = sadd.s32 %s92, 1
      %s94 = scalar_select %p91, %s92, %s93
      %p97 = pneg %p91
      %p98 = scmp.eq.s32.totalorder %s12, 1
      %p99 = por %p97, %p98
      %p100 = scmp.ne.s32.totalorder %s92, %s95
      %p101 = scmp.eq.s32.totalorder %s12, 0
      %p102 = por %p100, %p101
      %p103 = scmp.ne.s32.totalorder %s92, %s95
      %p104 = scmp.eq.s32.totalorder %s17, 1
      %p105 = por %p103, %p104
      %p106 = scmp.ne.s32.totalorder %s95, %s96
      %p107 = scmp.eq.s32.totalorder %s17, 0
      %p108 = por %p106, %p107
      %p109 = scmp.ne.s32.totalorder %s95, %s96
      %p110 = scmp.eq.s32.totalorder %s18, 1
      %p111 = por %p109, %p110
      %p113 = scmp.ne.s32.totalorder %s96, %s112
      %p114 = scmp.eq.s32.totalorder %s18, 0
      %p115 = por %p113, %p114
      %s116 = ssub.s32 %s19, %s31
      %p117 = scmp.eq.s32.totalorder %s116, 0
      %s119 = sadd.s32 %s118, 1
      %s120 = scalar_select %p117, %s118, %s119
      %p123 = pneg %p117
      %p124 = scmp.eq.s32.totalorder %s12, 1
      %p125 = por %p123, %p124
      %p126 = scmp.ne.s32.totalorder %s118, %s121
      %p127 = scmp.eq.s32.totalorder %s12, 0
      %p128 = por %p126, %p127
      %p129 = scmp.ne.s32.totalorder %s118, %s121
      %p130 = scmp.eq.s32.totalorder %s17, 1
      %p131 = por %p129, %p130
      %p132 = scmp.ne.s32.totalorder %s121, %s122
      %p133 = scmp.eq.s32.totalorder %s17, 0
      %p134 = por %p132, %p133
      %p135 = scmp.ne.s32.totalorder %s121, %s122
      %p136 = scmp.eq.s32.totalorder %s18, 1
      %p137 = por %p135, %p136
      %p139 = scmp.ne.s32.totalorder %s122, %s138
      %p140 = scmp.eq.s32.totalorder %s18, 0
      %p141 = por %p139, %p140
      %p142 = scmp.le.s32.totalorder 1, %s12
      %p143 = scmp.lt.s32.totalorder %s12, 3
      %p144 = pnand %p142, %p143
      %p145 = pneg %p144
      // Predicated region
      $region9: #{tpu_custom_call.1} parent=5 // pred_check
        _
      $region10: #{tpu_custom_call.1} parent=5 // pred_check_branch
        %147 = sbr.rel (%p144) target = $region12
      $region11: #{tpu_custom_call.1} parent=5 // pred_region
        %s148 = ssub.s32 %s12, 1
      $region12: #{tpu_custom_call.1} parent=5 // pred_fallthru
        _
      %p149 = scmp.lt.s32.totalorder %s12, 2
      // Predicated region
      $region13: #{tpu_custom_call.1} parent=5 // pred_check
        %p150 = pneg %p149
      $region14: #{tpu_custom_call.1} parent=5 // pred_check_branch
        %152 = sbr.rel (%p150) target = $region16
      $region15: #{tpu_custom_call.1} parent=5 // pred_region
        // Predicated region
        $region17: #{tpu_custom_call.1} parent=15 // pred_check
          %p153 = pneg %p46
        $region18: #{tpu_custom_call.1} parent=15 // pred_check_branch
          %155 = sbr.rel (%p153) target = $region20
        $region19: #{tpu_custom_call.1} parent=15 // pred_region
          %s156 = sadd.s32 %s19, %s20
          %s157 = smul.u32 4, %s156
          %p158 = scmp.lt.s32.totalorder %s157, 7
          %s159 = scalar_select %p158, %s157, 7
          %s160 = smul.addr %s159, 8
          %s161 = scalar_lea.vmem %s0, %s160
          %s162 = sadd.s32 %s19, %s20
          %s163 = smul.u32 4, %s162
        $region20: #{tpu_custom_call.1} parent=15 // pred_fallthru
          _
        // Predicated region
        $region21: #{tpu_custom_call.1} parent=15 // pred_check
          %p164 = pneg %p74
        $region22: #{tpu_custom_call.1} parent=15 // pred_check_branch
          %166 = sbr.rel (%p164) target = $region24
        $region23: #{tpu_custom_call.1} parent=15 // pred_region
          %s167 = sadd.s32 %s19, %s20
          %s168 = smul.u32 4, %s167
          %p169 = scmp.lt.s32.totalorder %s168, 7
          %s170 = scalar_select %p169, %s168, 7
          %s171 = smul.addr %s170, 8
          %s172 = scalar_lea.vmem %s1, %s171
          %s173 = sadd.s32 %s19, %s20
          %s174 = smul.u32 4, %s173
        $region24: #{tpu_custom_call.1} parent=15 // pred_fallthru
          _
        // Predicated region
        $region25: #{tpu_custom_call.1} parent=15 // pred_check
          %p175 = pneg %p102
        $region26: #{tpu_custom_call.1} parent=15 // pred_check_branch
          %177 = sbr.rel (%p175) target = $region28
        $region27: #{tpu_custom_call.1} parent=15 // pred_region
          %s178 = sadd.s32 %s19, %s20
          %s179 = smul.u32 4, %s178
          %p180 = scmp.lt.s32.totalorder %s179, 7
          %s181 = scalar_select %p180, %s179, 7
          %s182 = smul.addr %s181, 8
          %s183 = scalar_lea.vmem %s2, %s182
          %s184 = sadd.s32 %s19, %s20
          %s185 = smul.u32 4, %s184
        $region28: #{tpu_custom_call.1} parent=15 // pred_fallthru
          _
      $region16: #{tpu_custom_call.1} parent=5 // pred_fallthru
        _
      %p186 = scmp.le.s32.totalorder 1, %s12
      %p187 = scmp.lt.s32.totalorder %s12, 3
      %p188 = pnand %p186, %p187
      %p189 = pneg %p188
      // Predicated region
      $region29: #{tpu_custom_call.1} parent=5 // pred_check
        _
      $region30: #{tpu_custom_call.1} parent=5 // pred_check_branch
        %191 = sbr.rel (%p188) target = $region32
      $region31: #{tpu_custom_call.1} parent=5 // pred_region
        %s192 = ssub.s32 %s12, 1
        %s193 = sadd.s32 %s21, %s22
        %s194 = smul.u32 4, %s193
        %p195 = scmp.lt.s32.totalorder %s194, 7
        %s196 = scalar_select %p195, %s194, 7
        %s197 = smul.addr %s196, 8
        %s198 = scalar_lea.vmem %s0, %s197
        %p199 = pneg %p52
        %p200 = pneg %p49
        %s201 = sadd.s32 %s21, %s22
        %s202 = smul.u32 4, %s201
        %p203 = scmp.lt.s32.totalorder %s202, 7
        %s204 = scalar_select %p203, %s202, 7
        %s205 = smul.addr %s204, 8
        %s206 = scalar_lea.vmem %s1, %s205
        %p207 = pneg %p80
        %p208 = pneg %p77
        %s209 = sadd.s32 %s21, %s22
        %s210 = smul.u32 4, %s209
        %p211 = scmp.lt.s32.totalorder %s210, 7
        %s212 = scalar_select %p211, %s210, 7
        %s213 = smul.addr %s212, 8
        %s214 = scalar_lea.vmem %s2, %s213
        %p215 = pneg %p108
        %p216 = pneg %p105
        %p217 = pneg %p134
        %p218 = pneg %p131
        %s219 = sand.u32 %s121, 1
        %s220 = scalar_lea.sflag [#allocation4], %s219
        %s221 = sand.u32 %s121, 1
        %s222 = smul.addr %s221, 8
        %s223 = scalar_lea.vmem [#allocation3], %s222
        %s224 = sadd.s32 %s21, %s22
        %s225 = smul.u32 4, %s224
        %p226 = scmp.lt.s32.totalorder %s225, 7
        %s227 = scalar_select %p226, %s225, 7
        %s228 = smul.addr %s227, 8
        %s229 = scalar_lea.vmem %s0, %s228
        %s230 = sadd.s32 %s21, %s22
        %s231 = smul.u32 4, %s230
        %s232 = sadd.s32 %s21, %s22
        %s233 = smul.u32 4, %s232
        %p234 = scmp.lt.s32.totalorder %s233, 7
        %s235 = scalar_select %p234, %s233, 7
        %s236 = smul.addr %s235, 8
        %s237 = scalar_lea.vmem %s1, %s236
        %s238 = sadd.s32 %s21, %s22
        %s239 = smul.u32 4, %s238
        %s240 = sadd.s32 %s21, %s22
        %s241 = smul.u32 4, %s240
        %p242 = scmp.lt.s32.totalorder %s241, 7
        %s243 = scalar_select %p242, %s241, 7
        %s244 = smul.addr %s243, 8
        %s245 = scalar_lea.vmem %s2, %s244
        %s246 = sadd.s32 %s21, %s22
        %s247 = smul.u32 4, %s246
        %p248 = scmp.eq.s32.totalorder %s22, 0
        // Predicated region
        $region33: #{tpu_custom_call.1} parent=31 // pred_check
          %p249 = pneg %p248
        $region34: #{tpu_custom_call.1} parent=31 // pred_check_branch
          %251 = sbr.rel (%p249) target = $region36
        $region35: #{tpu_custom_call.1} parent=31 // pred_region
          %vm252 = vcmask 261120
          %253 = vst.msk [vmem:[#allocation2] sm:$0xff] %vm252, 0.0
        $region36: #{tpu_custom_call.1} parent=31 // pred_fallthru
          _
        %v254 = vld [vmem:[%s229] sm:$0xff]
        %v255 = vld [vmem:[%s229 + $0x8] sm:$0xff]
        %v256 = vld [vmem:[%s229 + $0x10] sm:$0xff]
        %v257 = vld [vmem:[%s229 + $0x18] sm:$0xff]
        %v258 = vld [vmem:[%s237] sm:$0xff]
        %v259 = vld [vmem:[%s237 + $0x8] sm:$0xff]
        %v260 = vld [vmem:[%s237 + $0x10] sm:$0xff]
        %v261 = vld [vmem:[%s237 + $0x18] sm:$0xff]
        %v262 = vld [vmem:[%s245] sm:$0xff]
        %v263 = vld [vmem:[%s245 + $0x8] sm:$0xff]
        %v264 = vld [vmem:[%s245 + $0x10] sm:$0xff]
        %v265 = vld [vmem:[%s245 + $0x18] sm:$0xff]
        %v266 = vmul.f32 %v254, %v254
        %v267 = vmul.f32 %v255, %v255
        %v268 = vmul.f32 %v256, %v256
        %v269 = vmul.f32 %v257, %v257
        %v270 = vmul.f32 %v258, 1.442695
        %v271 = vpow.pop %v270
        %v272 = vmul.f32 %v259, 1.442695
        %v273 = vpow.pop %v272
        %v274 = vmul.f32 %v260, 1.442695
        %v275 = vpow.pop %v274
        %v276 = vmul.f32 %v261, 1.442695
        %v277 = vpow.pop %v276
        %v278 = vadd.f32 %v266, %v271
        %v279 = vadd.f32 %v267, %v273
        %v280 = vadd.f32 %v268, %v275
        %v281 = vadd.f32 %v269, %v277
        %v282 = vsub.f32 %v278, %v258
        %v283 = vsub.f32 %v279, %v259
        %v284 = vsub.f32 %v280, %v260
        %v285 = vsub.f32 %v281, %v261
        %287 = vset.pattern.permute.xlu0 0
        %288 = vperm.xlu0 %287, %v262
        %v289 = vpop.permute.xlu0 %288
        %292 = vset.pattern.permute.xlu0 0
        %293 = vperm.xlu0 %292, %v263
        %v294 = vpop.permute.xlu0 %293
        %297 = vset.pattern.permute.xlu0 0
        %298 = vperm.xlu0 %297, %v264
        %v299 = vpop.permute.xlu0 %298
        %302 = vset.pattern.permute.xlu0 0
        %303 = vperm.xlu0 %302, %v265
        %v304 = vpop.permute.xlu0 %303
        %v306 = vmul.f32 %v282, %v289
        %v307 = vmul.f32 %v283, %v294
        %v308 = vmul.f32 %v284, %v299
        %v309 = vmul.f32 %v285, %v304
        %v310 = vld [vmem:[#allocation2] sm:$0x1]
        %vm311 = vcmask 261120
        %v312 = vsel %vm311, %v306, 0.0
        %v313 = vsel %vm311, %v307, 0.0
        %v314 = vadd.f32 %v312, %v313
        %v315 = vsel %vm311, %v308, 0.0
        %v316 = vadd.f32 %v314, %v315
        %v317 = vsel %vm311, %v309, 0.0
        %v318 = vadd.f32 %v316, %v317
        %v319 = vrot.slane %v318, 4
        %v320 = vadd.f32 %v318, %v319
        %v321 = vrot.slane %v320, 2
        %v322 = vadd.f32 %v320, %v321
        %v323 = vrot.slane %v322, 1
        %v324 = vadd.f32 %v322, %v323
        %v325 = vadd.f32 %v310, %v324
        %vm326 = vcmask 253952
        %327 = vst.msk [vmem:[#allocation2] sm:$0x1] %vm326, %v325
        // Predicated region
        $region37: #{tpu_custom_call.1} parent=31 // pred_check
          %p328 = pneg %p248
        $region38: #{tpu_custom_call.1} parent=31 // pred_check_branch
          %330 = sbr.rel (%p328) target = $region40
        $region39: #{tpu_custom_call.1} parent=31 // pred_region
          %v331 = vld [vmem:[#allocation2] sm:$0xff]
          %v332 = vsel %vm311, %v331, 0.0
          %333 = vadd.xlane.f32.xlu0 %v332
          %v334 = vpop.xlane.xlu0 %333
          %v335 = vrot.slane %v334, 4
          %v336 = vadd.f32 %v334, %v335
          %v337 = vrot.slane %v336, 2
          %v338 = vadd.f32 %v336, %v337
          %v339 = vrot.slane %v338, 1
          %v340 = vadd.f32 %v338, %v339
          %s341 = vtos %v340
          %v342 = vstv %s341
          %343 = vst [vmem:[%s223] sm:$0xff] %v342
        $region40: #{tpu_custom_call.1} parent=31 // pred_fallthru
          _
        %s344 = sand.u32 %s121, 1
        %s345 = scalar_lea.sflag [#allocation4], %s344
        %s346 = sand.u32 %s121, 1
        %s347 = smul.addr %s346, 8
        %s348 = scalar_lea.vmem [#allocation3], %s347
        // Predicated region
        $region41: #{tpu_custom_call.1} parent=31 // pred_check
          %p349 = pneg %p131
        $region42: #{tpu_custom_call.1} parent=31 // pred_check_branch
          %351 = sbr.rel (%p349) target = $region44
        $region43: #{tpu_custom_call.1} parent=31 // pred_region
          %353 = vsyncadd %s345, 0
          %s354 = smul.addr %s21, 8
          %s355 = scalar_lea.hbm %s3, %s354
          %s357 = sshll.u32 %s348, 4
          %s358 = int_to_ptr.vmem [resolvable:$true] %s357
          %s359 = sshll.u32 %s355, 4
          %s360 = int_to_ptr.hbm [resolvable:$true] %s359
          %362 = dma.vmem_to_hbm [thread:$0]  %s358, 128, %s360, %s345
        $region44: #{tpu_custom_call.1} parent=31 // pred_fallthru
          _
      $region32: #{tpu_custom_call.1} parent=5 // pred_fallthru
        _
      %p363 = scmp.le.s32.totalorder 2, %s12
      // Predicated region
      $region45: #{tpu_custom_call.1} parent=5 // pred_check
        %p364 = pneg %p363
      $region46: #{tpu_custom_call.1} parent=5 // pred_check_branch
        %366 = sbr.rel (%p364) target = $region48
      $region47: #{tpu_custom_call.1} parent=5 // pred_region
        %s367 = ssub.s32 %s12, 2
        // Predicated region
        $region49: #{tpu_custom_call.1} parent=47 // pred_check
          %p368 = pneg %p137
        $region50: #{tpu_custom_call.1} parent=47 // pred_check_branch
          %370 = sbr.rel (%p368) target = $region52
        $region51: #{tpu_custom_call.1} parent=47 // pred_region
          %s371 = sand.u32 %s122, 1
          %s372 = scalar_lea.sflag [#allocation4], %s371
          %s373 = sand.u32 %s122, 1
          %s374 = smul.addr %s373, 8
          %s375 = scalar_lea.vmem [#allocation3], %s374
          %377 = dma.done %s372, 128
        $region52: #{tpu_custom_call.1} parent=47 // pred_fallthru
          _
      $region48: #{tpu_custom_call.1} parent=5 // pred_fallthru
        _
    $region6: #{tpu_custom_call.1} parent=1 // loop_footer
      %s16 = sadd.s32 1, %s12
    $region7: #{tpu_custom_call.1} parent=1 // loop_footer_branch
      %11 = sbr.rel target = $region3
    $region8: #{tpu_custom_call.1} parent=1 // loop_exit
      _
    %378 = vsyncpa [#allocation4], 1
    %s379 = scalar_lea.sflag [#allocation4], 1
    %380 = vsyncpa %s379, 1

</llo_original>
